<compile_context>
chip_gen: v7x
topology: tpu7x:2x2x1
jax: 0.10.0
libtpu: 0.0.40
codegen_flags: <defaults>
</compile_context>

<pallas_src>
import functools
import math

import jax
import jax.numpy as jnp
from jax import lax
from jax.experimental import pallas as pl
from jax.experimental.pallas import tpu as pltpu


# ---------------- kernels ----------------

def _pool_mean_kernel(x_ref, p_ref, o_ref, *, scale_over_k):
    # x_ref: (tm, ncin); p_ref: (ncin, ncout) constant 0/1 pooling matrix.
    # One MXU matmul performs the group sum, the truncation to W columns and
    # the compaction to a dense (tm, ncout) slab; the only VPU work is the
    # scale of the small f32 result.  Assumes finite inputs (0*x == 0).
    acc = jnp.dot(x_ref[...], p_ref[...],
                  preferred_element_type=jnp.float32,
                  precision=lax.Precision.HIGHEST)
    o_ref[...] = (acc * scale_over_k).astype(o_ref.dtype)


def _pool_max_kernel(x_ref, s_ref, o_ref, *, kint, wm):
    # x_ref: (tm, ncin); s_ref: (wm, ncout) one-hot selection, S[c*kint, c]=1.
    # Shifted-window max (kint-1 lane-shifted elementwise maxima, kint small),
    # then a single MXU matmul compacts the group-start lanes into a dense
    # (tm, ncout) output -- no O(ncout) width-1 slices / concatenates.
    # Assumes finite inputs (0*x == 0 in the selection matmul).
    x = x_ref[...]
    red = x[:, 0:wm]
    for s in range(1, kint):
        red = jnp.maximum(red, x[:, s:s + wm])
    acc = jnp.dot(red, s_ref[...],
                  preferred_element_type=jnp.float32,
                  precision=lax.Precision.HIGHEST)
    o_ref[...] = acc.astype(o_ref.dtype)


def _trunc_kernel(x_ref, o_ref, *, ncout):
    # x_ref: (tm, in_cols >= ncout); static column truncation.
    o_ref[...] = x_ref[:, :ncout]


# ---------------- wrapper ----------------

def _round_up(a, b):
    return -(-a // b) * b


def _block_rows(batch, row_bytes, requested=None):
    """Rows per grid step.

    Sized so one input tile is ~4 MiB (double-buffered ~8 MiB: comfortably
    inside v7x's 64 MiB VMEM, well under v5e/v6e's 128 MiB), kept a multiple
    of 8 (sublane tiling) or the full batch, and -- in the auto path -- capped
    so large batches get >= 2 grid steps (v7x's two TensorCores both work).
    """
    if requested is not None:
        if requested >= batch:
            return batch
        return max(8, (requested // 8) * 8)
    budget = 4 * 1024 * 1024
    tm = max(8, budget // max(1, row_bytes))
    if tm >= batch:
        if batch < 16:
            return batch                      # full-extent row block
        tm = _round_up(pl.cdiv(batch, 2), 8)  # >= 2 grid steps for v7x
        if tm >= batch:
            return batch
        return tm
    return max(8, (tm // 8) * 8)


def pooling_linear(x, ncin, ncout, agg="mean", block_rows=None):
    """Pallas implementation of PoolingLinear.forward for 2-D input (B, ncin)."""
    assert x.ndim == 2 and x.shape[1] == ncin
    B = x.shape[0]
    itemsize = jnp.dtype(x.dtype).itemsize

    cparams = pltpu.CompilerParams(
        dimension_semantics=("parallel",),      # batch grid shards across TCs (v7x)
        vmem_limit_bytes=48 * 1024 * 1024,      # <= 64 MiB physical per TC on v7x
    )

    if agg == "trunc":
        # A multiple of 128 is always a legal minor block dim: DMA only the
        # columns we need instead of all ncin.
        in_cols = ncin if ncout == ncin else min(ncin, _round_up(ncout, 128))
        tm = _block_rows(B, in_cols * itemsize, block_rows)
        return pl.pallas_call(
            functools.partial(_trunc_kernel, ncout=ncout),
            out_shape=jax.ShapeDtypeStruct((B, ncout), x.dtype),
            grid=(pl.cdiv(B, tm),),
            in_specs=[pl.BlockSpec((tm, in_cols), lambda i: (i, 0))],
            out_specs=pl.BlockSpec((tm, ncout), lambda i: (i, 0)),
            compiler_params=cparams,
            cost_estimate=pl.CostEstimate(
                flops=0, transcendentals=0,
                bytes_accessed=B * (in_cols + ncout) * itemsize),
        )(x)

    if agg not in ("mean", "max"):
        raise ValueError(agg)

    k = 1.0 * ncin / ncout
    kint = int(k)
    scale = float(math.sqrt(k))   # sqrt of the *float* ratio, as in the reference
    W = ncout * kint

    tm = _block_rows(B, ncin * itemsize, block_rows)
    grid = (pl.cdiv(B, tm),)
    x_spec = pl.BlockSpec((tm, ncin), lambda i: (i, 0))
    out_spec = pl.BlockSpec((tm, ncout), lambda i: (i, 0))

    rows_in = jnp.arange(ncin)[:, None]
    cols = jnp.arange(ncout)[None, :]

    if agg == "mean":
        # 0/1 pooling matrix in x's dtype (exactly representable); rows >= W
        # are zero so no truncation slice is needed anywhere.
        mat = ((rows_in // kint == cols) & (rows_in < W)).astype(x.dtype)
        kernel = functools.partial(_pool_mean_kernel, scale_over_k=scale / kint)
        flops = 2 * B * ncin * ncout
    else:
        wm = W - kint + 1
        rows_red = jnp.arange(wm)[:, None]
        mat = (rows_red == cols * kint).astype(x.dtype)   # one-hot group starts
        kernel = functools.partial(_pool_max_kernel, kint=kint, wm=wm)
        flops = B * (kint - 1) * wm + 2 * B * wm * ncout

    # Constant block index -> the matrix is DMA'd once and stays resident.
    mat_spec = pl.BlockSpec(mat.shape, lambda i: (0, 0))

    return pl.pallas_call(
        kernel,
        out_shape=jax.ShapeDtypeStruct((B, ncout), x.dtype),
        grid=grid,
        in_specs=[x_spec, mat_spec],
        out_specs=out_spec,
        compiler_params=cparams,
        cost_estimate=pl.CostEstimate(
            flops=flops, transcendentals=0,
            bytes_accessed=(B * ncin + B * ncout + int(mat.size)) * itemsize),
    )(x, mat)
    # TODO(synk): for extremely wide ncin (VMEM-sized tiles at tm=8), add a
    # second grid axis blocking columns on multiples of lcm(kint, 128).


# ---------------- reference (pure JAX) ----------------

def pooling_linear_ref(x, ncin, ncout, agg="mean"):
    if agg == "trunc":
        return x[:, :ncout]
    k = 1.0 * ncin / ncout
    kint = int(k)
    out = x[:, : ncout * kint].reshape(x.shape[0], ncout, -1)
    if agg == "mean":
        return (jnp.float32(math.sqrt(k)) * out.mean(axis=2)).astype(x.dtype)
    elif agg == "max":
        return out.max(axis=2)
    raise ValueError(agg)


# ---------------- main ----------------

if __name__ == "__main__":
    key = jax.random.PRNGKey(0)
    ok = True

    cases = [
        # (B, ncin, ncout, block_rows)
        (2, 32, 8, None),     # k = 4, single tile (original test shape)
        (40, 64, 16, 16),     # k = 4, multi-tile grid with a partial last block
        (10, 36, 8, None),    # non-integer k = 4.5 (column truncation + scale)
        (24, 512, 48, None),  # k = 10.67; exercises 128-col trunc DMA + auto tiling
    ]
    for idx, (B, ncin, ncout, br) in enumerate(cases):
        key, sub = jax.random.split(key)
        x = jax.random.normal(sub, (B, ncin), dtype=jnp.float32)
        for agg in ("mean", "max", "trunc"):
            out = jax.block_until_ready(
                pooling_linear(x, ncin, ncout, agg=agg, block_rows=br))
            ref = pooling_linear_ref(x, ncin, ncout, agg=agg)
            if out.shape != ref.shape or not bool(
                jnp.allclose(out, ref, atol=1e-5, rtol=1e-5)
            ):
                ok = False
                print(f"MISMATCH case={idx} agg={agg}")

    if ok:
        print("KERNEL_OK")
</pallas_src>

<mosaic_0001>
module attributes {stable_mosaic.version = 11 : i64} {
  func.func @_pool_mean_kernel(%arg0: i32, %arg1: memref<2x32xf32, #tpu.memory_space<vmem>>, %arg2: memref<32x8xf32, #tpu.memory_space<vmem>>, %arg3: memref<2x8xf32, #tpu.memory_space<vmem>>) attributes {dimension_semantics = [#tpu.dimension_semantics<parallel>], iteration_bounds = array<i64: 1>, scalar_prefetch = 0 : i64, scratch_operands = 0 : i64, tpu.core_type = #tpu.core_type<tc>, window_params = [{transform_indices = @transform_0, window_bounds = array<i64: 2, 32>}, {pipeline_mode = #tpu.pipeline_mode<synchronous>, transform_indices = @transform_1, window_bounds = array<i64: 32, 8>}, {transform_indices = @transform_2, window_bounds = array<i64: 2, 8>}]} {
    %c0 = arith.constant 0 : index
    %c0_0 = arith.constant 0 : index
    %0 = vector.load %arg1[%c0, %c0_0] : memref<2x32xf32, #tpu.memory_space<vmem>>, vector<2x32xf32>
    %c0_1 = arith.constant 0 : index
    %c0_2 = arith.constant 0 : index
    %1 = vector.load %arg2[%c0_1, %c0_2] : memref<32x8xf32, #tpu.memory_space<vmem>>, vector<32x8xf32>
    %cst = arith.constant dense<0.000000e+00> : vector<2x8xf32>
    %2 = tpu.matmul %0, %1, %cst {dimension_numbers = #tpu.dot_dimension_numbers<[1], [0], [0], [1], [0, 0, 1, 1], [], []>, precision = #tpu.contract_precision<fp32>} : vector<2x32xf32>, vector<32x8xf32>, vector<2x8xf32> -> vector<2x8xf32>
    %cst_3 = arith.constant 5.000000e-01 : f32
    %3 = vector.broadcast %cst_3 : f32 to vector<2x8xf32>
    %4 = arith.mulf %2, %3 : vector<2x8xf32>
    %c0_4 = arith.constant 0 : index
    %c0_5 = arith.constant 0 : index
    %5 = vector.load %arg3[%c0_4, %c0_5] : memref<2x8xf32, #tpu.memory_space<vmem>>, vector<2x8xf32>
    tpu.vector_store %arg3[%c0_4, %c0_5], %4 {strides = array<i32>} : memref<2x8xf32, #tpu.memory_space<vmem>>, vector<2x8xf32>,
    return
  }
  func.func @transform_0(%arg0: i32) -> (i32, i32) {
    %c0_i32 = arith.constant 0 : i32
    %c0_i32_0 = arith.constant 0 : i32
    return %arg0, %c0_i32 : i32, i32
  }
  func.func @transform_1(%arg0: i32) -> (i32, i32) {
    %c0_i32 = arith.constant 0 : i32
    %c0_i32_0 = arith.constant 0 : i32
    %c0_i32_1 = arith.constant 0 : i32
    return %c0_i32, %c0_i32_0 : i32, i32
  }
  func.func @transform_2(%arg0: i32) -> (i32, i32) {
    %c0_i32 = arith.constant 0 : i32
    %c0_i32_0 = arith.constant 0 : i32
    return %arg0, %c0_i32 : i32, i32
  }
}

</mosaic_0001>

<llo_original>
// kernel: tpu_custom_call.1
$region0: #{tpu_custom_call.1}
  #allocation0 [shape = 'u32[]', space=smem, size = 0x4, offset = 0x4, fixed_abs, tag = 'smem constant byte address 0x4 - core index']
  #allocation1 [shape = 'u32[144,128]{1,0:T(1,128)}', space=vmem, size = 0x12000, scoped, tag = 'internal scratch']
  %s0 = inlined_call_operand.vmem [shape: f32[2,32], index: 0, kind: input, shape index: {}]
  %s1 = inlined_call_operand.vmem [shape: f32[32,8], index: 1, kind: input, shape index: {}]
  %s2 = inlined_call_operand.hbm [shape: f32[2,8], index: 2, kind: output, shape index: {}]
  %s3 = sld [smem:[#allocation0]]
  $region18: #{tpu_custom_call.1} parent=0
    _
  %s5 = ssub.s32 1, %s3
  %s6 = scalar_select 0, %s5, %s3
  $region1: #{tpu_custom_call.1} parent=0
    #allocation2 [shape = 'u8[1024]{0}', space=vmem, size = 0x400, scoped, tag = 'output window, operand 0, single buffered']
    #allocation3 [shape = 's32[1]{0}', space=sflag, size = 0x4, scoped, tag = 'scoped memory for tpu_custom_call.1']
    %7 = vsyncpa [#allocation3], 0
    // Predicated region
    $region2: #{tpu_custom_call.1} parent=1 // pred_check
      _
    $region3: #{tpu_custom_call.1} parent=1 // pred_check_branch
      %9 = sbr.rel (0) target = $region5
    $region4: #{tpu_custom_call.1} parent=1 // pred_region
      _
    $region5: #{tpu_custom_call.1} parent=1 // pred_fallthru
      _
    // Predicated region
    $region6: #{tpu_custom_call.1} parent=1 // pred_check
      _
    $region7: #{tpu_custom_call.1} parent=1 // pred_check_branch
      %11 = sbr.rel (0) target = $region9
    $region8: #{tpu_custom_call.1} parent=1 // pred_region
      _
    $region9: #{tpu_custom_call.1} parent=1 // pred_fallthru
      _
    %v12 = vld [vmem:[%s0] sm:$0x3]
    %v13 = vld [vmem:[%s1] sm:$0xff]
    %v14 = vld [vmem:[%s1 + $0x8] sm:$0xff]
    %v15 = vld [vmem:[%s1 + $0x10] sm:$0xff]
    %v16 = vld [vmem:[%s1 + $0x18] sm:$0xff]
    %vm17 = vcmask 261120
    %v19 = vsel %vm17, %v12, 0
    %21 = vmatprep.subr.mxu0 0.0
    %v22 = vand.u32 %v13, 4294901760
    %23 = vmatpush1.msra.mxu0 %v22
    %24 = vmatprep.subr.mxu0 0.0
    %v25 = vand.u32 %v14, 4294901760
    %26 = vmatpush1.msra.mxu0 %v25
    %27 = vmatprep.subr.mxu0 0.0
    %v28 = vand.u32 %v15, 4294901760
    %29 = vmatpush1.msra.mxu0 %v28
    %30 = vmatprep.subr.mxu0 0.0
    %v31 = vand.u32 %v16, 4294901760
    %32 = vmatpush1.msra.mxu0 %v31
    %33 = vmatprep.subr.mxu0 0.0
    %34 = vmatpush1.msra.mxu0 0.0
    %35 = vmatprep.subr.mxu0 0.0
    %36 = vmatpush1.msra.mxu0 0.0
    %37 = vmatprep.subr.mxu0 0.0
    %38 = vmatpush1.msra.mxu0 0.0
    %39 = vmatprep.subr.mxu0 0.0
    %40 = vmatpush1.msra.mxu0 0.0
    %41 = vmatprep.subr.mxu0 0.0
    %42 = vmatpush1.msra.mxu0 0.0
    %43 = vmatprep.subr.mxu0 0.0
    %44 = vmatpush1.msra.mxu0 0.0
    %45 = vmatprep.subr.mxu0 0.0
    %46 = vmatpush1.msra.mxu0 0.0
    %47 = vmatprep.subr.mxu0 0.0
    %48 = vmatpush1.msra.mxu0 0.0
    %49 = vmatprep.subr.mxu0 0.0
    %50 = vmatpush1.msra.mxu0 0.0
    %51 = vmatprep.subr.mxu0 0.0
    %52 = vmatpush1.msra.mxu0 0.0
    %53 = vmatprep.subr.mxu0 0.0
    %54 = vmatpush1.msra.mxu0 0.0
    %55 = vmatprep.subr.mxu0 0.0
    %56 = vmatpush1.msra.mxu0 0.0
    %57 = vmatprep.subr.mxu0 0.0
    %58 = vmatpush1.msra.mxu0 0.0
    %59 = vmatprep.subr.mxu0 0.0
    %60 = vmatpush1.msra.mxu0 0.0
    %61 = vmatprep.subr.mxu0 0.0
    %62 = vmatpush1.msra.mxu0 0.0
    %63 = vmatprep.subr.mxu0 0.0
    %64 = vmatpush1.msra.mxu0 0.0
    %65 = vmatprep.subr.mxu0 0.0
    %66 = vmatpush1.msra.mxu0 0.0
    %67 = vmatprep.subr.mxu0 0.0
    %68 = vmatpush1.msra.mxu0 0.0
    %69 = vmatprep.subr.mxu0 0.0
    %70 = vmatpush1.msra.mxu0 0.0
    %71 = vmatprep.subr.mxu0 0.0
    %72 = vmatpush1.msra.mxu0 0.0
    %73 = vmatprep.subr.mxu0 0.0
    %74 = vmatpush1.msra.mxu0 0.0
    %75 = vmatprep.subr.mxu0 0.0
    %76 = vmatpush1.msra.mxu0 0.0
    %77 = vmatprep.subr.mxu0 0.0
    %78 = vmatpush1.msra.mxu0 0.0
    %79 = vmatprep.subr.mxu0 0.0
    %80 = vmatpush1.msra.mxu0 0.0
    %81 = vmatprep.subr.mxu0 0.0
    %82 = vmatpush1.msra.mxu0 0.0
    %83 = vmatprep.subr.mxu0 0.0
    %84 = vmatpush1.msra.mxu0 0.0
    %85 = vmatprep.subr.mxu0 0.0
    %86 = vmatpush1.msra.mxu0 0.0
    %87 = vmatprep.subr.mxu0 0.0
    %88 = vmatpush1.msra.mxu0 0.0
    %89 = vmatprep.mubr.f32.mxu0 0.0
    %v90 = vand.u32 %v19, 4294901760
    %v91 = vsub.f32 %v19, %v90
    %v92 = vand.u32 %v91, 4294901760
    %v93 = vsub.f32 %v91, %v92
    %v94 = vand.u32 %v93, 4294901760
    %95 = vmatmul.mubr.f32.gmra.mrb[0].mxu0 %v94
    %v96 = vpop.f32.mrb[0].mxu0
    %v97 = vadd.f32 0.0, %v96
    %v98 = vpop.f32.mrb[0].mxu0
    %99 = vdwg.mxu0
    %100 = vmatprep.subr.mxu0 0.0
    %v101 = vand.u32 %v13, 4294901760
    %v102 = vsub.f32 %v13, %v101
    %v103 = vand.u32 %v102, 4294901760
    %v104 = vsub.f32 %v102, %v103
    %v105 = vand.u32 %v104, 4294901760
    %106 = vmatpush1.msra.mxu0 %v105
    %107 = vmatprep.subr.mxu0 0.0
    %v108 = vand.u32 %v14, 4294901760
    %v109 = vsub.f32 %v14, %v108
    %v110 = vand.u32 %v109, 4294901760
    %v111 = vsub.f32 %v109, %v110
    %v112 = vand.u32 %v111, 4294901760
    %113 = vmatpush1.msra.mxu0 %v112
    %114 = vmatprep.subr.mxu0 0.0
    %v115 = vand.u32 %v15, 4294901760
    %v116 = vsub.f32 %v15, %v115
    %v117 = vand.u32 %v116, 4294901760
    %v118 = vsub.f32 %v116, %v117
    %v119 = vand.u32 %v118, 4294901760
    %120 = vmatpush1.msra.mxu0 %v119
    %121 = vmatprep.subr.mxu0 0.0
    %v122 = vand.u32 %v16, 4294901760
    %v123 = vsub.f32 %v16, %v122
    %v124 = vand.u32 %v123, 4294901760
    %v125 = vsub.f32 %v123, %v124
    %v126 = vand.u32 %v125, 4294901760
    %127 = vmatpush1.msra.mxu0 %v126
    %128 = vmatprep.subr.mxu0 0.0
    %129 = vmatpush1.msra.mxu0 0.0
    %130 = vmatprep.subr.mxu0 0.0
    %131 = vmatpush1.msra.mxu0 0.0
    %132 = vmatprep.subr.mxu0 0.0
    %133 = vmatpush1.msra.mxu0 0.0
    %134 = vmatprep.subr.mxu0 0.0
    %135 = vmatpush1.msra.mxu0 0.0
    %136 = vmatprep.subr.mxu0 0.0
    %137 = vmatpush1.msra.mxu0 0.0
    %138 = vmatprep.subr.mxu0 0.0
    %139 = vmatpush1.msra.mxu0 0.0
    %140 = vmatprep.subr.mxu0 0.0
    %141 = vmatpush1.msra.mxu0 0.0
    %142 = vmatprep.subr.mxu0 0.0
    %143 = vmatpush1.msra.mxu0 0.0
    %144 = vmatprep.subr.mxu0 0.0
    %145 = vmatpush1.msra.mxu0 0.0
    %146 = vmatprep.subr.mxu0 0.0
    %147 = vmatpush1.msra.mxu0 0.0
    %148 = vmatprep.subr.mxu0 0.0
    %149 = vmatpush1.msra.mxu0 0.0
    %150 = vmatprep.subr.mxu0 0.0
    %151 = vmatpush1.msra.mxu0 0.0
    %152 = vmatprep.subr.mxu0 0.0
    %153 = vmatpush1.msra.mxu0 0.0
    %154 = vmatprep.subr.mxu0 0.0
    %155 = vmatpush1.msra.mxu0 0.0
    %156 = vmatprep.subr.mxu0 0.0
    %157 = vmatpush1.msra.mxu0 0.0
    %158 = vmatprep.subr.mxu0 0.0
    %159 = vmatpush1.msra.mxu0 0.0
    %160 = vmatprep.subr.mxu0 0.0
    %161 = vmatpush1.msra.mxu0 0.0
    %162 = vmatprep.subr.mxu0 0.0
    %163 = vmatpush1.msra.mxu0 0.0
    %164 = vmatprep.subr.mxu0 0.0
    %165 = vmatpush1.msra.mxu0 0.0
    %166 = vmatprep.subr.mxu0 0.0
    %167 = vmatpush1.msra.mxu0 0.0
    %168 = vmatprep.subr.mxu0 0.0
    %169 = vmatpush1.msra.mxu0 0.0
    %170 = vmatprep.subr.mxu0 0.0
    %171 = vmatpush1.msra.mxu0 0.0
    %172 = vmatprep.subr.mxu0 0.0
    %173 = vmatpush1.msra.mxu0 0.0
    %174 = vmatprep.subr.mxu0 0.0
    %175 = vmatpush1.msra.mxu0 0.0
    %176 = vmatprep.subr.mxu0 0.0
    %177 = vmatpush1.msra.mxu0 0.0
    %178 = vmatprep.subr.mxu0 0.0
    %179 = vmatpush1.msra.mxu0 0.0
    %180 = vmatprep.subr.mxu0 0.0
    %181 = vmatpush1.msra.mxu0 0.0
    %182 = vmatprep.subr.mxu0 0.0
    %183 = vmatpush1.msra.mxu0 0.0
    %184 = vmatprep.mubr.f32.mxu0 0.0
    %v185 = vand.u32 %v19, 4294901760
    %186 = vmatmul.mubr.f32.gmra.mrb[0].mxu0 %v185
    %v187 = vpop.f32.mrb[0].mxu0
    %v188 = vadd.f32 %v97, %v187
    %v189 = vpop.f32.mrb[0].mxu0
    %190 = vdwg.mxu0
    %191 = vmatprep.subr.mxu0 0.0
    %v192 = vand.u32 %v13, 4294901760
    %v193 = vsub.f32 %v13, %v192
    %194 = vmatpush1.msra.mxu0 %v193
    %195 = vmatprep.subr.mxu0 0.0
    %v196 = vand.u32 %v14, 4294901760
    %v197 = vsub.f32 %v14, %v196
    %198 = vmatpush1.msra.mxu0 %v197
    %199 = vmatprep.subr.mxu0 0.0
    %v200 = vand.u32 %v15, 4294901760
    %v201 = vsub.f32 %v15, %v200
    %202 = vmatpush1.msra.mxu0 %v201
    %203 = vmatprep.subr.mxu0 0.0
    %v204 = vand.u32 %v16, 4294901760
    %v205 = vsub.f32 %v16, %v204
    %206 = vmatpush1.msra.mxu0 %v205
    %207 = vmatprep.subr.mxu0 0.0
    %208 = vmatpush1.msra.mxu0 0.0
    %209 = vmatprep.subr.mxu0 0.0
    %210 = vmatpush1.msra.mxu0 0.0
    %211 = vmatprep.subr.mxu0 0.0
    %212 = vmatpush1.msra.mxu0 0.0
    %213 = vmatprep.subr.mxu0 0.0
    %214 = vmatpush1.msra.mxu0 0.0
    %215 = vmatprep.subr.mxu0 0.0
    %216 = vmatpush1.msra.mxu0 0.0
    %217 = vmatprep.subr.mxu0 0.0
    %218 = vmatpush1.msra.mxu0 0.0
    %219 = vmatprep.subr.mxu0 0.0
    %220 = vmatpush1.msra.mxu0 0.0
    %221 = vmatprep.subr.mxu0 0.0
    %222 = vmatpush1.msra.mxu0 0.0
    %223 = vmatprep.subr.mxu0 0.0
    %224 = vmatpush1.msra.mxu0 0.0
    %225 = vmatprep.subr.mxu0 0.0
    %226 = vmatpush1.msra.mxu0 0.0
    %227 = vmatprep.subr.mxu0 0.0
    %228 = vmatpush1.msra.mxu0 0.0
    %229 = vmatprep.subr.mxu0 0.0
    %230 = vmatpush1.msra.mxu0 0.0
    %231 = vmatprep.subr.mxu0 0.0
    %232 = vmatpush1.msra.mxu0 0.0
    %233 = vmatprep.subr.mxu0 0.0
    %234 = vmatpush1.msra.mxu0 0.0
    %235 = vmatprep.subr.mxu0 0.0
    %236 = vmatpush1.msra.mxu0 0.0
    %237 = vmatprep.subr.mxu0 0.0
    %238 = vmatpush1.msra.mxu0 0.0
    %239 = vmatprep.subr.mxu0 0.0
    %240 = vmatpush1.msra.mxu0 0.0
    %241 = vmatprep.subr.mxu0 0.0
    %242 = vmatpush1.msra.mxu0 0.0
    %243 = vmatprep.subr.mxu0 0.0
    %244 = vmatpush1.msra.mxu0 0.0
    %245 = vmatprep.subr.mxu0 0.0
    %246 = vmatpush1.msra.mxu0 0.0
    %247 = vmatprep.subr.mxu0 0.0
    %248 = vmatpush1.msra.mxu0 0.0
    %249 = vmatprep.subr.mxu0 0.0
    %250 = vmatpush1.msra.mxu0 0.0
    %251 = vmatprep.subr.mxu0 0.0
    %252 = vmatpush1.msra.mxu0 0.0
    %253 = vmatprep.subr.mxu0 0.0
    %254 = vmatpush1.msra.mxu0 0.0
    %255 = vmatprep.subr.mxu0 0.0
    %256 = vmatpush1.msra.mxu0 0.0
    %257 = vmatprep.subr.mxu0 0.0
    %258 = vmatpush1.msra.mxu0 0.0
    %259 = vmatprep.subr.mxu0 0.0
    %260 = vmatpush1.msra.mxu0 0.0
    %261 = vmatprep.subr.mxu0 0.0
    %262 = vmatpush1.msra.mxu0 0.0
    %263 = vmatprep.mubr.f32.mxu0 0.0
    %v264 = vand.u32 %v19, 4294901760
    %v265 = vsub.f32 %v19, %v264
    %266 = vmatmul.mubr.f32.gmra.mrb[0].mxu0 %v265
    %v267 = vpop.f32.mrb[0].mxu0
    %v268 = vadd.f32 %v188, %v267
    %v269 = vpop.f32.mrb[0].mxu0
    %270 = vdwg.mxu0
    %271 = vmatprep.subr.mxu0 0.0
    %v272 = vand.u32 %v13, 4294901760
    %273 = vmatpush1.msra.mxu0 %v272
    %274 = vmatprep.subr.mxu0 0.0
    %v275 = vand.u32 %v14, 4294901760
    %276 = vmatpush1.msra.mxu0 %v275
    %277 = vmatprep.subr.mxu0 0.0
    %v278 = vand.u32 %v15, 4294901760
    %279 = vmatpush1.msra.mxu0 %v278
    %280 = vmatprep.subr.mxu0 0.0
    %v281 = vand.u32 %v16, 4294901760
    %282 = vmatpush1.msra.mxu0 %v281
    %283 = vmatprep.subr.mxu0 0.0
    %284 = vmatpush1.msra.mxu0 0.0
    %285 = vmatprep.subr.mxu0 0.0
    %286 = vmatpush1.msra.mxu0 0.0
    %287 = vmatprep.subr.mxu0 0.0
    %288 = vmatpush1.msra.mxu0 0.0
    %289 = vmatprep.subr.mxu0 0.0
    %290 = vmatpush1.msra.mxu0 0.0
    %291 = vmatprep.subr.mxu0 0.0
    %292 = vmatpush1.msra.mxu0 0.0
    %293 = vmatprep.subr.mxu0 0.0
    %294 = vmatpush1.msra.mxu0 0.0
    %295 = vmatprep.subr.mxu0 0.0
    %296 = vmatpush1.msra.mxu0 0.0
    %297 = vmatprep.subr.mxu0 0.0
    %298 = vmatpush1.msra.mxu0 0.0
    %299 = vmatprep.subr.mxu0 0.0
    %300 = vmatpush1.msra.mxu0 0.0
    %301 = vmatprep.subr.mxu0 0.0
    %302 = vmatpush1.msra.mxu0 0.0
    %303 = vmatprep.subr.mxu0 0.0
    %304 = vmatpush1.msra.mxu0 0.0
    %305 = vmatprep.subr.mxu0 0.0
    %306 = vmatpush1.msra.mxu0 0.0
    %307 = vmatprep.subr.mxu0 0.0
    %308 = vmatpush1.msra.mxu0 0.0
    %309 = vmatprep.subr.mxu0 0.0
    %310 = vmatpush1.msra.mxu0 0.0
    %311 = vmatprep.subr.mxu0 0.0
    %312 = vmatpush1.msra.mxu0 0.0
    %313 = vmatprep.subr.mxu0 0.0
    %314 = vmatpush1.msra.mxu0 0.0
    %315 = vmatprep.subr.mxu0 0.0
    %316 = vmatpush1.msra.mxu0 0.0
    %317 = vmatprep.subr.mxu0 0.0
    %318 = vmatpush1.msra.mxu0 0.0
    %319 = vmatprep.subr.mxu0 0.0
    %320 = vmatpush1.msra.mxu0 0.0
    %321 = vmatprep.subr.mxu0 0.0
    %322 = vmatpush1.msra.mxu0 0.0
    %323 = vmatprep.subr.mxu0 0.0
    %324 = vmatpush1.msra.mxu0 0.0
    %325 = vmatprep.subr.mxu0 0.0
    %326 = vmatpush1.msra.mxu0 0.0
    %327 = vmatprep.subr.mxu0 0.0
    %328 = vmatpush1.msra.mxu0 0.0
    %329 = vmatprep.subr.mxu0 0.0
    %330 = vmatpush1.msra.mxu0 0.0
    %331 = vmatprep.subr.mxu0 0.0
    %332 = vmatpush1.msra.mxu0 0.0
    %333 = vmatprep.subr.mxu0 0.0
    %334 = vmatpush1.msra.mxu0 0.0
    %335 = vmatprep.subr.mxu0 0.0
    %336 = vmatpush1.msra.mxu0 0.0
    %337 = vmatprep.subr.mxu0 0.0
    %338 = vmatpush1.msra.mxu0 0.0
    %339 = vmatprep.mubr.f32.mxu0 0.0
    %v340 = vand.u32 %v19, 4294901760
    %v341 = vsub.f32 %v19, %v340
    %v342 = vand.u32 %v341, 4294901760
    %343 = vmatmul.mubr.f32.gmra.mrb[0].mxu0 %v342
    %v344 = vpop.f32.mrb[0].mxu0
    %v345 = vadd.f32 %v268, %v344
    %v346 = vpop.f32.mrb[0].mxu0
    %347 = vdwg.mxu0
    %348 = vmatprep.subr.mxu0 0.0
    %v349 = vand.u32 %v13, 4294901760
    %v350 = vsub.f32 %v13, %v349
    %v351 = vand.u32 %v350, 4294901760
    %352 = vmatpush1.msra.mxu0 %v351
    %353 = vmatprep.subr.mxu0 0.0
    %v354 = vand.u32 %v14, 4294901760
    %v355 = vsub.f32 %v14, %v354
    %v356 = vand.u32 %v355, 4294901760
    %357 = vmatpush1.msra.mxu0 %v356
    %358 = vmatprep.subr.mxu0 0.0
    %v359 = vand.u32 %v15, 4294901760
    %v360 = vsub.f32 %v15, %v359
    %v361 = vand.u32 %v360, 4294901760
    %362 = vmatpush1.msra.mxu0 %v361
    %363 = vmatprep.subr.mxu0 0.0
    %v364 = vand.u32 %v16, 4294901760
    %v365 = vsub.f32 %v16, %v364
    %v366 = vand.u32 %v365, 4294901760
    %367 = vmatpush1.msra.mxu0 %v366
    %368 = vmatprep.subr.mxu0 0.0
    %369 = vmatpush1.msra.mxu0 0.0
    %370 = vmatprep.subr.mxu0 0.0
    %371 = vmatpush1.msra.mxu0 0.0
    %372 = vmatprep.subr.mxu0 0.0
    %373 = vmatpush1.msra.mxu0 0.0
    %374 = vmatprep.subr.mxu0 0.0
    %375 = vmatpush1.msra.mxu0 0.0
    %376 = vmatprep.subr.mxu0 0.0
    %377 = vmatpush1.msra.mxu0 0.0
    %378 = vmatprep.subr.mxu0 0.0
    %379 = vmatpush1.msra.mxu0 0.0
    %380 = vmatprep.subr.mxu0 0.0
    %381 = vmatpush1.msra.mxu0 0.0
    %382 = vmatprep.subr.mxu0 0.0
    %383 = vmatpush1.msra.mxu0 0.0
    %384 = vmatprep.subr.mxu0 0.0
    %385 = vmatpush1.msra.mxu0 0.0
    %386 = vmatprep.subr.mxu0 0.0
    %387 = vmatpush1.msra.mxu0 0.0
    %388 = vmatprep.subr.mxu0 0.0
    %389 = vmatpush1.msra.mxu0 0.0
    %390 = vmatprep.subr.mxu0 0.0
    %391 = vmatpush1.msra.mxu0 0.0
    %392 = vmatprep.subr.mxu0 0.0
    %393 = vmatpush1.msra.mxu0 0.0
    %394 = vmatprep.subr.mxu0 0.0
    %395 = vmatpush1.msra.mxu0 0.0
    %396 = vmatprep.subr.mxu0 0.0
    %397 = vmatpush1.msra.mxu0 0.0
    %398 = vmatprep.subr.mxu0 0.0
    %399 = vmatpush1.msra.mxu0 0.0
    %400 = vmatprep.subr.mxu0 0.0
    %401 = vmatpush1.msra.mxu0 0.0
    %402 = vmatprep.subr.mxu0 0.0
    %403 = vmatpush1.msra.mxu0 0.0
    %404 = vmatprep.subr.mxu0 0.0
    %405 = vmatpush1.msra.mxu0 0.0
    %406 = vmatprep.subr.mxu0 0.0
    %407 = vmatpush1.msra.mxu0 0.0
    %408 = vmatprep.subr.mxu0 0.0
    %409 = vmatpush1.msra.mxu0 0.0
    %410 = vmatprep.subr.mxu0 0.0
    %411 = vmatpush1.msra.mxu0 0.0
    %412 = vmatprep.subr.mxu0 0.0
    %413 = vmatpush1.msra.mxu0 0.0
    %414 = vmatprep.subr.mxu0 0.0
    %415 = vmatpush1.msra.mxu0 0.0
    %416 = vmatprep.subr.mxu0 0.0
    %417 = vmatpush1.msra.mxu0 0.0
    %418 = vmatprep.subr.mxu0 0.0
    %419 = vmatpush1.msra.mxu0 0.0
    %420 = vmatprep.subr.mxu0 0.0
    %421 = vmatpush1.msra.mxu0 0.0
    %422 = vmatprep.subr.mxu0 0.0
    %423 = vmatpush1.msra.mxu0 0.0
    %424 = vmatprep.mubr.f32.mxu0 0.0
    %v425 = vand.u32 %v19, 4294901760
    %426 = vmatmul.mubr.f32.gmra.mrb[0].mxu0 %v425
    %v427 = vpop.f32.mrb[0].mxu0
    %v428 = vadd.f32 %v345, %v427
    %v429 = vpop.f32.mrb[0].mxu0
    %430 = vdwg.mxu0
    %431 = vmatprep.subr.mxu0 0.0
    %v432 = vand.u32 %v13, 4294901760
    %433 = vmatpush1.msra.mxu0 %v432
    %434 = vmatprep.subr.mxu0 0.0
    %v435 = vand.u32 %v14, 4294901760
    %436 = vmatpush1.msra.mxu0 %v435
    %437 = vmatprep.subr.mxu0 0.0
    %v438 = vand.u32 %v15, 4294901760
    %439 = vmatpush1.msra.mxu0 %v438
    %440 = vmatprep.subr.mxu0 0.0
    %v441 = vand.u32 %v16, 4294901760
    %442 = vmatpush1.msra.mxu0 %v441
    %443 = vmatprep.subr.mxu0 0.0
    %444 = vmatpush1.msra.mxu0 0.0
    %445 = vmatprep.subr.mxu0 0.0
    %446 = vmatpush1.msra.mxu0 0.0
    %447 = vmatprep.subr.mxu0 0.0
    %448 = vmatpush1.msra.mxu0 0.0
    %449 = vmatprep.subr.mxu0 0.0
    %450 = vmatpush1.msra.mxu0 0.0
    %451 = vmatprep.subr.mxu0 0.0
    %452 = vmatpush1.msra.mxu0 0.0
    %453 = vmatprep.subr.mxu0 0.0
    %454 = vmatpush1.msra.mxu0 0.0
    %455 = vmatprep.subr.mxu0 0.0
    %456 = vmatpush1.msra.mxu0 0.0
    %457 = vmatprep.subr.mxu0 0.0
    %458 = vmatpush1.msra.mxu0 0.0
    %459 = vmatprep.subr.mxu0 0.0
    %460 = vmatpush1.msra.mxu0 0.0
    %461 = vmatprep.subr.mxu0 0.0
    %462 = vmatpush1.msra.mxu0 0.0
    %463 = vmatprep.subr.mxu0 0.0
    %464 = vmatpush1.msra.mxu0 0.0
    %465 = vmatprep.subr.mxu0 0.0
    %466 = vmatpush1.msra.mxu0 0.0
    %467 = vmatprep.subr.mxu0 0.0
    %468 = vmatpush1.msra.mxu0 0.0
    %469 = vmatprep.subr.mxu0 0.0
    %470 = vmatpush1.msra.mxu0 0.0
    %471 = vmatprep.subr.mxu0 0.0
    %472 = vmatpush1.msra.mxu0 0.0
    %473 = vmatprep.subr.mxu0 0.0
    %474 = vmatpush1.msra.mxu0 0.0
    %475 = vmatprep.subr.mxu0 0.0
    %476 = vmatpush1.msra.mxu0 0.0
    %477 = vmatprep.subr.mxu0 0.0
    %478 = vmatpush1.msra.mxu0 0.0
    %479 = vmatprep.subr.mxu0 0.0
    %480 = vmatpush1.msra.mxu0 0.0
    %481 = vmatprep.subr.mxu0 0.0
    %482 = vmatpush1.msra.mxu0 0.0
    %483 = vmatprep.subr.mxu0 0.0
    %484 = vmatpush1.msra.mxu0 0.0
    %485 = vmatprep.subr.mxu0 0.0
    %486 = vmatpush1.msra.mxu0 0.0
    %487 = vmatprep.subr.mxu0 0.0
    %488 = vmatpush1.msra.mxu0 0.0
    %489 = vmatprep.subr.mxu0 0.0
    %490 = vmatpush1.msra.mxu0 0.0
    %491 = vmatprep.subr.mxu0 0.0
    %492 = vmatpush1.msra.mxu0 0.0
    %493 = vmatprep.subr.mxu0 0.0
    %494 = vmatpush1.msra.mxu0 0.0
    %495 = vmatprep.subr.mxu0 0.0
    %496 = vmatpush1.msra.mxu0 0.0
    %497 = vmatprep.subr.mxu0 0.0
    %498 = vmatpush1.msra.mxu0 0.0
    %499 = vmatprep.mubr.f32.mxu0 0.0
    %v500 = vand.u32 %v19, 4294901760
    %501 = vmatmul.mubr.f32.gmra.mrb[0].mxu0 %v500
    %v502 = vpop.f32.mrb[0].mxu0
    %v503 = vadd.f32 %v428, %v502
    %v504 = vpop.f32.mrb[0].mxu0
    %505 = vdwg.mxu0
    %v506 = vmul.f32 %v503, 0.5
    %vm507 = vcmask 58368
    %508 = vst.msk [vmem:[#allocation2] sm:$0x3] %vm507, %v506
    // Predicated region
    $region10: #{tpu_custom_call.1} parent=1 // pred_check
      _
    $region11: #{tpu_custom_call.1} parent=1 // pred_check_branch
      %510 = sbr.rel (0) target = $region13
    $region12: #{tpu_custom_call.1} parent=1 // pred_region
      %s512 = ssub.s32 32, 32
      %513 = vsyncadd [#allocation3], %s512
      %s515 = sshll.u32 [#allocation2], 4
      %s516 = int_to_ptr.vmem [resolvable:$true] %s515
      %518 = dma.vmem_to_hbm [thread:$0]  %s516, 32, %s2, [#allocation3]
    $region13: #{tpu_custom_call.1} parent=1 // pred_fallthru
      _
    // Predicated region
    $region14: #{tpu_custom_call.1} parent=1 // pred_check
      _
    $region15: #{tpu_custom_call.1} parent=1 // pred_check_branch
      %520 = sbr.rel (0) target = $region17
    $region16: #{tpu_custom_call.1} parent=1 // pred_region
      %521 = dma.done [#allocation3], 32
    $region17: #{tpu_custom_call.1} parent=1 // pred_fallthru
      _
    %522 = vsyncpa [#allocation3], 1

</llo_original>
